<compile_context>
chip_gen: v5e
topology: v5e:2x2
jax: 0.10.0
libtpu: 0.0.40
codegen_flags: <defaults>
</compile_context>

<pallas_src>
import functools

import jax
import jax.numpy as jnp
from jax import lax
from jax.experimental import pallas as pl
from jax.experimental.pallas import tpu as pltpu


def _field_kernel(coord_ref, gridfw1t_ref, consts_ref, w2t_ref, w3t_ref,
                  w4t_ref, b4t_ref, out_ref, *, H, W, compute_dtype):
    coord = coord_ref[0]                     # (3, TN) f32, points on the lane axis
    tn = coord.shape[-1]
    x = coord[0:1, :]                        # (1, TN) -> width  index (W)
    y = coord[1:2, :]                        # (1, TN) -> height index (H)
    z = coord[2:3, :]                        # (1, TN)

    # F.grid_sample 'bilinear', align_corners=False -> continuous pixel coords.
    ix = ((x + 1.0) * W - 1.0) * 0.5         # (1, TN)
    iy = ((y + 1.0) * H - 1.0) * 0.5         # (1, TN)

    # Separable closed-form bilinear hat weights. abs/max math happens at
    # (H, TN) + (W, TN) width; the expansion to (H*W, TN) is one
    # broadcast-multiply + layout-preserving reshape (W multiple of 8).
    # Out-of-range taps get weight exactly 0 -> zeros padding for free.
    h_idx = lax.broadcasted_iota(jnp.int32, (H, tn), 0).astype(jnp.float32)
    w_idx = lax.broadcasted_iota(jnp.int32, (W, tn), 0).astype(jnp.float32)
    wy = jnp.maximum(1.0 - jnp.abs(h_idx - iy), 0.0)        # (H, TN)
    wx = jnp.maximum(1.0 - jnp.abs(w_idx - ix), 0.0)        # (W, TN)
    weight_t = (wy[:, None, :] * wx[None, :, :]).reshape(H * W, tn)
    weight_t = weight_t.astype(compute_dtype)               # (HW, TN)

    # Packed small constants: [W1 z-column, b1, b2, b3] as (C, 1) columns.
    w1z_t = consts_ref[:, 0:1]
    b1_t = consts_ref[:, 1:2]
    b2_t = consts_ref[:, 2:3]
    b3_t = consts_ref[:, 3:4]

    # Layer 1: grid_sample folded with W1 -> one (C, HW) @ (HW, TN) matmul.
    # Every matmul below has TN on the MXU output-lane axis (full width).
    h1 = jnp.dot(gridfw1t_ref[...], weight_t,
                 preferred_element_type=jnp.float32)         # (C, TN) f32
    h1 = jnp.maximum(h1 + w1z_t * z + b1_t, 0.0).astype(compute_dtype)
    h2 = jnp.maximum(
        jnp.dot(w2t_ref[...], h1, preferred_element_type=jnp.float32) + b2_t,
        0.0).astype(compute_dtype)                           # (C, TN)
    h3 = jnp.maximum(
        jnp.dot(w3t_ref[...], h2, preferred_element_type=jnp.float32) + b3_t,
        0.0).astype(compute_dtype)                           # (C, TN)
    # Output layer: (OD, TN) block -> lane-dense (unmasked) stores.
    out_t = (jnp.dot(w4t_ref[...], h3, preferred_element_type=jnp.float32)
             + b4t_ref[...])
    out_ref[0] = out_t.astype(out_ref.dtype)


def hybrid_ground_plan_field(coord, grid, params, *, tn=128, use_bf16=True):
    """coord: (B, N, 3); grid: (1, C, H, W); params: MLP weights (in,out)+biases.

    tn: points per grid step (multiple of 128). v7x (2 TensorCores): keep
    B*N/tn >= 2 and even. v5e/v6e (1 TC): prefer a larger tn (e.g. 256) to
    amortize per-step pipeline overhead.
    """
    B, N, _ = coord.shape
    _, C, H, W = grid.shape
    W1, b1, W2, b2, W3, b3, W4, b4 = params
    OD = W4.shape[1]
    HW = H * W
    assert N % tn == 0
    assert tn % 128 == 0, "tn must be lane-aligned (multiple of 128)"

    compute_dtype = jnp.bfloat16 if use_bf16 else jnp.float32

    # Fold grid_sample with the first MLP layer (both linear), already
    # transposed for the left-applied pipeline:  (C, C) @ (C, HW) -> (C, HW).
    # NOTE: this small fold runs as an XLA matmul outside the kernel each call;
    # constant-fold / cache it if params are static in your setup.
    gridfw1t = jnp.dot(W1[:C].T, grid[0].reshape(C, HW),
                       precision=lax.Precision.HIGHEST).astype(compute_dtype)
    # Pack the z-column of W1 and the first three biases into one block
    # (fewer input DMAs / double-buffer allocations per launch).
    consts = jnp.stack([W1[C], b1, b2, b3], axis=1)          # (C, 4) f32
    w2t = W2.T.astype(compute_dtype)                         # (C, C)
    w3t = W3.T.astype(compute_dtype)                         # (C, C)
    w4t = W4.T.astype(compute_dtype)                         # (OD, C)
    b4t = b4.reshape(OD, 1)                                  # (OD, 1) f32

    coord_t = jnp.transpose(coord, (0, 2, 1))                # (B, 3, N)

    def const_spec(shape):
        nd = len(shape)
        return pl.BlockSpec(shape, lambda b, n, _nd=nd: (0,) * _nd)

    kernel = functools.partial(_field_kernel, H=H, W=W,
                               compute_dtype=compute_dtype)
    out_t = pl.pallas_call(
        kernel,
        out_shape=jax.ShapeDtypeStruct((B, OD, N), jnp.float32),
        grid_spec=pltpu.PrefetchScalarGridSpec(
            num_scalar_prefetch=0,
            grid=(B, N // tn),
            in_specs=[
                pl.BlockSpec((1, 3, tn), lambda b, n: (b, 0, n)),
                const_spec((C, HW)),        # gridfw1^T
                const_spec((C, 4)),         # [w1z, b1, b2, b3]
                const_spec((C, C)),         # W2^T
                const_spec((C, C)),         # W3^T
                const_spec((OD, C)),        # W4^T
                const_spec((OD, 1)),        # b4^T
            ],
            out_specs=pl.BlockSpec((1, OD, tn), lambda b, n: (b, 0, n)),
        ),
        compiler_params=pltpu.CompilerParams(
            dimension_semantics=("parallel", "parallel")),
    )(coord_t, gridfw1t, consts, w2t, w3t, w4t, b4t)
    return jnp.transpose(out_t, (0, 2, 1))                   # (B, N, OD)


# ---------------- pure-JAX reference (mirrors the torch forward) ----------------
def ref_forward(coord, grid, params):
    W1, b1, W2, b2, W3, b3, W4, b4 = params
    _, C, H, Wd = grid.shape
    x = coord[..., 0]
    y = coord[..., 1]
    z = coord[..., 2]
    ix = ((x + 1.0) * Wd - 1.0) * 0.5
    iy = ((y + 1.0) * H - 1.0) * 0.5
    x0 = jnp.floor(ix).astype(jnp.int32)
    y0 = jnp.floor(iy).astype(jnp.int32)
    wx1 = ix - x0
    wx0 = 1.0 - wx1
    wy1 = iy - y0
    wy0 = 1.0 - wy1
    g = grid[0]                                            # (C, H, W)

    def tap(yi, xi, w):
        valid = (xi >= 0) & (xi < Wd) & (yi >= 0) & (yi < H)
        xc = jnp.clip(xi, 0, Wd - 1)
        yc = jnp.clip(yi, 0, H - 1)
        vals = g[:, yc, xc]                                # (C, B, N)
        return jnp.where(valid, w, 0.0)[None] * vals

    feat = (tap(y0, x0, wy0 * wx0) + tap(y0, x0 + 1, wy0 * wx1)
            + tap(y0 + 1, x0, wy1 * wx0) + tap(y0 + 1, x0 + 1, wy1 * wx1))
    feat = jnp.transpose(feat, (1, 2, 0))                  # (B, N, C)
    h = jnp.concatenate([feat, z[..., None]], axis=-1)
    h = jax.nn.relu(h @ W1 + b1)
    h = jax.nn.relu(h @ W2 + b2)
    h = jax.nn.relu(h @ W3 + b3)
    return h @ W4 + b4


def _kaiming(key, fan_in, fan_out):
    # kaiming_normal_, a=0, nonlinearity='relu', mode='fan_in' -> std=sqrt(2/fan_in)
    std = (2.0 / fan_in) ** 0.5
    return jax.random.normal(key, (fan_in, fan_out), jnp.float32) * std


if __name__ == "__main__":
    # Module config: resolution_per_dim=(16, 16), feature_dim=32, out_dim=8.
    # torch grid_sample requires the grid batch (1) to match the coord batch,
    # so the forward implies batch_size == 1.
    B, N = 1, 256
    C, H, W, OD = 32, 16, 16, 8

    key = jax.random.PRNGKey(0)
    k_grid, k1, k2, k3, k4, k_xy, k_z = jax.random.split(key, 7)

    grid_param = jax.random.normal(k_grid, (1, C, H, W), jnp.float32) * 0.1
    params = (
        _kaiming(k1, C + 1, C), jnp.zeros((C,), jnp.float32),
        _kaiming(k2, C, C),     jnp.zeros((C,), jnp.float32),
        _kaiming(k3, C, C),     jnp.zeros((C,), jnp.float32),
        _kaiming(k4, C, OD),    jnp.zeros((OD,), jnp.float32),
    )

    # Sample coordinates in [-1.1, 1.1]^2 x [-1, 1] (some points fall outside
    # the grid to exercise zeros padding).
    xy = jax.random.uniform(k_xy, (B, N, 2), jnp.float32, -1.1, 1.1)
    z = jax.random.uniform(k_z, (B, N, 1), jnp.float32, -1.0, 1.0)
    coord = jnp.concatenate([xy, z], axis=-1)              # (B, N, 3)

    ref = ref_forward(coord, grid_param, params)

    # Strict check on the f32 path.
    out_f32 = hybrid_ground_plan_field(coord, grid_param, params,
                                       tn=128, use_bf16=False)
    out_f32 = jax.block_until_ready(out_f32)
    assert out_f32.shape == (B, N, OD)
    assert jnp.allclose(out_f32, ref, atol=1e-4, rtol=1e-4), (
        float(jnp.max(jnp.abs(out_f32 - ref))))

    # bf16-MXU fast path (f32 accumulation); looser tolerance for the casts.
    out_bf16 = hybrid_ground_plan_field(coord, grid_param, params,
                                        tn=128, use_bf16=True)
    out_bf16 = jax.block_until_ready(out_bf16)
    assert out_bf16.shape == (B, N, OD)
    assert jnp.allclose(out_bf16, ref, atol=5e-2, rtol=5e-2), (
        float(jnp.max(jnp.abs(out_bf16 - ref))))

    print("KERNEL_OK")
</pallas_src>

<mosaic_0001>
module attributes {stable_mosaic.version = 11 : i64} {
  func.func @_field_kernel(%arg0: i32, %arg1: i32, %arg2: memref<1x3x128xf32, #tpu.memory_space<vmem>>, %arg3: memref<32x256xf32, #tpu.memory_space<vmem>>, %arg4: memref<32x4xf32, #tpu.memory_space<vmem>>, %arg5: memref<32x32xf32, #tpu.memory_space<vmem>>, %arg6: memref<32x32xf32, #tpu.memory_space<vmem>>, %arg7: memref<8x32xf32, #tpu.memory_space<vmem>>, %arg8: memref<8x1xf32, #tpu.memory_space<vmem>>, %arg9: memref<1x8x128xf32, #tpu.memory_space<vmem>>) attributes {dimension_semantics = [#tpu.dimension_semantics<parallel>, #tpu.dimension_semantics<parallel>], iteration_bounds = array<i64: 1, 2>, scalar_prefetch = 0 : i64, scratch_operands = 0 : i64, tpu.core_type = #tpu.core_type<tc>, window_params = [{transform_indices = @transform_0, window_bounds = array<i64: 1, 3, 128>}, {pipeline_mode = #tpu.pipeline_mode<synchronous>, transform_indices = @transform_1, window_bounds = array<i64: 32, 256>}, {pipeline_mode = #tpu.pipeline_mode<synchronous>, transform_indices = @transform_2, window_bounds = array<i64: 32, 4>}, {pipeline_mode = #tpu.pipeline_mode<synchronous>, transform_indices = @transform_3, window_bounds = array<i64: 32, 32>}, {pipeline_mode = #tpu.pipeline_mode<synchronous>, transform_indices = @transform_4, window_bounds = array<i64: 32, 32>}, {pipeline_mode = #tpu.pipeline_mode<synchronous>, transform_indices = @transform_5, window_bounds = array<i64: 8, 32>}, {pipeline_mode = #tpu.pipeline_mode<synchronous>, transform_indices = @transform_6, window_bounds = array<i64: 8, 1>}, {transform_indices = @transform_7, window_bounds = array<i64: 1, 8, 128>}]} {
    %c0 = arith.constant 0 : index
    %c0_0 = arith.constant 0 : index
    %c0_1 = arith.constant 0 : index
    %0 = vector.load %arg2[%c0, %c0_0, %c0_1] : memref<1x3x128xf32, #tpu.memory_space<vmem>>, vector<1x3x128xf32>
    %1 = vector.shape_cast %0 : vector<1x3x128xf32> to vector<3x128xf32>
    %2 = vector.extract_strided_slice %1 {offsets = [0, 0], sizes = [1, 128], strides = [1, 1]} : vector<3x128xf32> to vector<1x128xf32>
    %3 = vector.extract_strided_slice %1 {offsets = [1, 0], sizes = [1, 128], strides = [1, 1]} : vector<3x128xf32> to vector<1x128xf32>
    %4 = vector.extract_strided_slice %1 {offsets = [2, 0], sizes = [1, 128], strides = [1, 1]} : vector<3x128xf32> to vector<1x128xf32>
    %cst = arith.constant 1.000000e+00 : f32
    %5 = vector.broadcast %cst : f32 to vector<1x128xf32>
    %6 = arith.addf %2, %5 : vector<1x128xf32>
    %cst_2 = arith.constant 1.600000e+01 : f32
    %7 = vector.broadcast %cst_2 : f32 to vector<1x128xf32>
    %8 = arith.mulf %6, %7 : vector<1x128xf32>
    %cst_3 = arith.constant 1.000000e+00 : f32
    %9 = vector.broadcast %cst_3 : f32 to vector<1x128xf32>
    %10 = arith.subf %8, %9 : vector<1x128xf32>
    %cst_4 = arith.constant 5.000000e-01 : f32
    %11 = vector.broadcast %cst_4 : f32 to vector<1x128xf32>
    %12 = arith.mulf %10, %11 : vector<1x128xf32>
    %cst_5 = arith.constant 1.000000e+00 : f32
    %13 = vector.broadcast %cst_5 : f32 to vector<1x128xf32>
    %14 = arith.addf %3, %13 : vector<1x128xf32>
    %cst_6 = arith.constant 1.600000e+01 : f32
    %15 = vector.broadcast %cst_6 : f32 to vector<1x128xf32>
    %16 = arith.mulf %14, %15 : vector<1x128xf32>
    %cst_7 = arith.constant 1.000000e+00 : f32
    %17 = vector.broadcast %cst_7 : f32 to vector<1x128xf32>
    %18 = arith.subf %16, %17 : vector<1x128xf32>
    %cst_8 = arith.constant 5.000000e-01 : f32
    %19 = vector.broadcast %cst_8 : f32 to vector<1x128xf32>
    %20 = arith.mulf %18, %19 : vector<1x128xf32>
    %21 = tpu.iota {dimensions = array<i32: 0>} : vector<16x128xi32>
    %22 = arith.sitofp %21 : vector<16x128xi32> to vector<16x128xf32>
    %23 = tpu.iota {dimensions = array<i32: 0>} : vector<16x128xi32>
    %24 = arith.sitofp %23 : vector<16x128xi32> to vector<16x128xf32>
    %25 = vector.broadcast %20 : vector<1x128xf32> to vector<16x128xf32>
    %26 = arith.subf %22, %25 : vector<16x128xf32>
    %27 = math.absf %26 : vector<16x128xf32>
    %cst_9 = arith.constant 1.000000e+00 : f32
    %28 = vector.broadcast %cst_9 : f32 to vector<16x128xf32>
    %29 = arith.subf %28, %27 : vector<16x128xf32>
    %cst_10 = arith.constant 0.000000e+00 : f32
    %30 = vector.broadcast %cst_10 : f32 to vector<16x128xf32>
    %31 = arith.maximumf %29, %30 : vector<16x128xf32>
    %32 = vector.broadcast %12 : vector<1x128xf32> to vector<16x128xf32>
    %33 = arith.subf %24, %32 : vector<16x128xf32>
    %34 = math.absf %33 : vector<16x128xf32>
    %cst_11 = arith.constant 1.000000e+00 : f32
    %35 = vector.broadcast %cst_11 : f32 to vector<16x128xf32>
    %36 = arith.subf %35, %34 : vector<16x128xf32>
    %cst_12 = arith.constant 0.000000e+00 : f32
    %37 = vector.broadcast %cst_12 : f32 to vector<16x128xf32>
    %38 = arith.maximumf %36, %37 : vector<16x128xf32>
    %39 = vector.shape_cast %31 : vector<16x128xf32> to vector<16x1x128xf32>
    %40 = vector.shape_cast %38 : vector<16x128xf32> to vector<1x16x128xf32>
    %41 = vector.broadcast %39 : vector<16x1x128xf32> to vector<16x16x128xf32>
    %42 = vector.broadcast %40 : vector<1x16x128xf32> to vector<16x16x128xf32>
    %43 = arith.mulf %41, %42 : vector<16x16x128xf32>
    %44 = vector.shape_cast %43 : vector<16x16x128xf32> to vector<256x128xf32>
    %c0_13 = arith.constant 0 : index
    %c0_14 = arith.constant 0 : index
    %45 = vector.load %arg4[%c0_13, %c0_14] : memref<32x4xf32, #tpu.memory_space<vmem>>, vector<32x1xf32>
    %c0_15 = arith.constant 0 : index
    %c1 = arith.constant 1 : index
    %46 = vector.load %arg4[%c0_15, %c1] : memref<32x4xf32, #tpu.memory_space<vmem>>, vector<32x1xf32>
    %c0_16 = arith.constant 0 : index
    %c2 = arith.constant 2 : index
    %47 = vector.load %arg4[%c0_16, %c2] : memref<32x4xf32, #tpu.memory_space<vmem>>, vector<32x1xf32>
    %c0_17 = arith.constant 0 : index
    %c3 = arith.constant 3 : index
    %48 = vector.load %arg4[%c0_17, %c3] : memref<32x4xf32, #tpu.memory_space<vmem>>, vector<32x1xf32>
    %c0_18 = arith.constant 0 : index
    %c0_19 = arith.constant 0 : index
    %49 = vector.load %arg3[%c0_18, %c0_19] : memref<32x256xf32, #tpu.memory_space<vmem>>, vector<32x256xf32>
    %cst_20 = arith.constant dense<0.000000e+00> : vector<32x128xf32>
    %50 = tpu.matmul %49, %44, %cst_20 {dimension_numbers = #tpu.dot_dimension_numbers<[1], [0], [0], [1], [0, 0, 1, 1], [], []>} : vector<32x256xf32>, vector<256x128xf32>, vector<32x128xf32> -> vector<32x128xf32>
    %51 = vector.broadcast %45 : vector<32x1xf32> to vector<32x128xf32>
    %52 = vector.broadcast %4 : vector<1x128xf32> to vector<32x128xf32>
    %53 = arith.mulf %51, %52 : vector<32x128xf32>
    %54 = arith.addf %50, %53 : vector<32x128xf32>
    %55 = vector.broadcast %46 : vector<32x1xf32> to vector<32x128xf32>
    %56 = arith.addf %54, %55 : vector<32x128xf32>
    %cst_21 = arith.constant 0.000000e+00 : f32
    %57 = vector.broadcast %cst_21 : f32 to vector<32x128xf32>
    %58 = arith.maximumf %56, %57 : vector<32x128xf32>
    %c0_22 = arith.constant 0 : index
    %c0_23 = arith.constant 0 : index
    %59 = vector.load %arg5[%c0_22, %c0_23] : memref<32x32xf32, #tpu.memory_space<vmem>>, vector<32x32xf32>
    %cst_24 = arith.constant dense<0.000000e+00> : vector<32x128xf32>
    %60 = tpu.matmul %59, %58, %cst_24 {dimension_numbers = #tpu.dot_dimension_numbers<[1], [0], [0], [1], [0, 0, 1, 1], [], []>} : vector<32x32xf32>, vector<32x128xf32>, vector<32x128xf32> -> vector<32x128xf32>
    %61 = vector.broadcast %47 : vector<32x1xf32> to vector<32x128xf32>
    %62 = arith.addf %60, %61 : vector<32x128xf32>
    %cst_25 = arith.constant 0.000000e+00 : f32
    %63 = vector.broadcast %cst_25 : f32 to vector<32x128xf32>
    %64 = arith.maximumf %62, %63 : vector<32x128xf32>
    %c0_26 = arith.constant 0 : index
    %c0_27 = arith.constant 0 : index
    %65 = vector.load %arg6[%c0_26, %c0_27] : memref<32x32xf32, #tpu.memory_space<vmem>>, vector<32x32xf32>
    %cst_28 = arith.constant dense<0.000000e+00> : vector<32x128xf32>
    %66 = tpu.matmul %65, %64, %cst_28 {dimension_numbers = #tpu.dot_dimension_numbers<[1], [0], [0], [1], [0, 0, 1, 1], [], []>} : vector<32x32xf32>, vector<32x128xf32>, vector<32x128xf32> -> vector<32x128xf32>
    %67 = vector.broadcast %48 : vector<32x1xf32> to vector<32x128xf32>
    %68 = arith.addf %66, %67 : vector<32x128xf32>
    %cst_29 = arith.constant 0.000000e+00 : f32
    %69 = vector.broadcast %cst_29 : f32 to vector<32x128xf32>
    %70 = arith.maximumf %68, %69 : vector<32x128xf32>
    %c0_30 = arith.constant 0 : index
    %c0_31 = arith.constant 0 : index
    %71 = vector.load %arg7[%c0_30, %c0_31] : memref<8x32xf32, #tpu.memory_space<vmem>>, vector<8x32xf32>
    %cst_32 = arith.constant dense<0.000000e+00> : vector<8x128xf32>
    %72 = tpu.matmul %71, %70, %cst_32 {dimension_numbers = #tpu.dot_dimension_numbers<[1], [0], [0], [1], [0, 0, 1, 1], [], []>} : vector<8x32xf32>, vector<32x128xf32>, vector<8x128xf32> -> vector<8x128xf32>
    %c0_33 = arith.constant 0 : index
    %c0_34 = arith.constant 0 : index
    %73 = vector.load %arg8[%c0_33, %c0_34] : memref<8x1xf32, #tpu.memory_space<vmem>>, vector<8x1xf32>
    %74 = vector.broadcast %73 : vector<8x1xf32> to vector<8x128xf32>
    %75 = arith.addf %72, %74 : vector<8x128xf32>
    %c0_35 = arith.constant 0 : index
    %c0_36 = arith.constant 0 : index
    %c0_37 = arith.constant 0 : index
    %76 = vector.load %arg9[%c0_35, %c0_36, %c0_37] : memref<1x8x128xf32, #tpu.memory_space<vmem>>, vector<1x8x128xf32>
    %77 = vector.shape_cast %76 : vector<1x8x128xf32> to vector<8x128xf32>
    %78 = vector.shape_cast %75 : vector<8x128xf32> to vector<1x8x128xf32>
    tpu.vector_store %arg9[%c0_35, %c0_36, %c0_37], %78 {strides = array<i32>} : memref<1x8x128xf32, #tpu.memory_space<vmem>>, vector<1x8x128xf32>,
    return
  }
  func.func @transform_0(%arg0: i32, %arg1: i32) -> (i32, i32, i32) {
    %c0_i32 = arith.constant 0 : i32
    %c0_i32_0 = arith.constant 0 : i32
    return %arg0, %c0_i32, %arg1 : i32, i32, i32
  }
  func.func @transform_1(%arg0: i32, %arg1: i32) -> (i32, i32) {
    %c0_i32 = arith.constant 0 : i32
    %c0_i32_0 = arith.constant 0 : i32
    %c0_i32_1 = arith.constant 0 : i32
    return %c0_i32, %c0_i32_0 : i32, i32
  }
  func.func @transform_2(%arg0: i32, %arg1: i32) -> (i32, i32) {
    %c0_i32 = arith.constant 0 : i32
    %c0_i32_0 = arith.constant 0 : i32
    %c0_i32_1 = arith.constant 0 : i32
    return %c0_i32, %c0_i32_0 : i32, i32
  }
  func.func @transform_3(%arg0: i32, %arg1: i32) -> (i32, i32) {
    %c0_i32 = arith.constant 0 : i32
    %c0_i32_0 = arith.constant 0 : i32
    %c0_i32_1 = arith.constant 0 : i32
    return %c0_i32, %c0_i32_0 : i32, i32
  }
  func.func @transform_4(%arg0: i32, %arg1: i32) -> (i32, i32) {
    %c0_i32 = arith.constant 0 : i32
    %c0_i32_0 = arith.constant 0 : i32
    %c0_i32_1 = arith.constant 0 : i32
    return %c0_i32, %c0_i32_0 : i32, i32
  }
  func.func @transform_5(%arg0: i32, %arg1: i32) -> (i32, i32) {
    %c0_i32 = arith.constant 0 : i32
    %c0_i32_0 = arith.constant 0 : i32
    %c0_i32_1 = arith.constant 0 : i32
    return %c0_i32, %c0_i32_0 : i32, i32
  }
  func.func @transform_6(%arg0: i32, %arg1: i32) -> (i32, i32) {
    %c0_i32 = arith.constant 0 : i32
    %c0_i32_0 = arith.constant 0 : i32
    %c0_i32_1 = arith.constant 0 : i32
    return %c0_i32, %c0_i32_0 : i32, i32
  }
  func.func @transform_7(%arg0: i32, %arg1: i32) -> (i32, i32, i32) {
    %c0_i32 = arith.constant 0 : i32
    %c0_i32_0 = arith.constant 0 : i32
    return %arg0, %c0_i32, %arg1 : i32, i32, i32
  }
}

</mosaic_0001>

<llo_original>
// kernel: tpu_custom_call.1
$region0: #{tpu_custom_call.1}
  #allocation0 [shape = 'u32[]', space=smem, size = 0x4, offset = 0x4, fixed_abs, tag = 'smem constant byte address 0x4 - core index']
  #allocation1 [shape = 'u32[72,128]{1,0:T(1,128)}', space=vmem, size = 0x9000, scoped, tag = 'internal scratch']
  %s0 = inlined_call_operand.vmem [shape: f32[1,3,256], index: 0, kind: input, shape index: {}]
  %s1 = inlined_call_operand.hbm [shape: f32[32,256], index: 1, kind: input, shape index: {}]
  %s2 = inlined_call_operand.vmem [shape: f32[32,4], index: 2, kind: input, shape index: {}]
  %s3 = inlined_call_operand.vmem [shape: f32[32,32], index: 3, kind: input, shape index: {}]
  %s4 = inlined_call_operand.hbm [shape: f32[32,32], index: 4, kind: input, shape index: {}]
  %s5 = inlined_call_operand.vmem [shape: f32[8,32], index: 5, kind: input, shape index: {}]
  %s6 = inlined_call_operand.vmem [shape: f32[8,1], index: 6, kind: input, shape index: {}]
  %s7 = inlined_call_operand.hbm [shape: f32[1,8,256], index: 7, kind: output, shape index: {}]
  %s8 = sld [smem:[#allocation0]]
  $region69: #{tpu_custom_call.1} parent=0
    _
  %s10 = ssub.s32 1, %s8
  %s11 = scalar_select 0, %s10, %s8
  $region1: #{tpu_custom_call.1} parent=0
    #allocation2 [shape = 'u8[32768]{0}', space=vmem, size = 0x8000, scoped, tag = 'input window, operand 1, single buffered']
    #allocation3 [shape = 's32[2]{0}', space=sflag, size = 0x8, scoped, tag = 'scoped memory for tpu_custom_call.1']
    #allocation4 [shape = 's32[2]{0}', space=sflag, size = 0x8, scoped, tag = 'scoped memory for tpu_custom_call.1']
    #allocation5 [shape = 'u8[16384]{0}', space=vmem, size = 0x4000, scoped, tag = 'input window, operand 4, single buffered']
    #allocation6 [shape = 's32[1]{0}', space=sflag, size = 0x4, scoped, tag = 'scoped memory for tpu_custom_call.1']
    #allocation7 [shape = 'u8[8192]{0}', space=vmem, size = 0x2000, scoped, tag = 'output window, operand 0']
    %12 = vsyncpa [#allocation3], 0
    %13 = vsyncpa [#allocation6], 0
    %14 = vsyncpa [#allocation4], 0
    %s15 = scalar_lea.sflag [#allocation4], 1
    %16 = vsyncpa %s15, 0
    loop: start=0, step=1, limit=4
    $region2: #{tpu_custom_call.1} parent=1 // loop_pre_header
      _
    $region3: #{tpu_custom_call.1} parent=1 // loop_header
      %s18 = sphi 0, %s22
      %p19 = scmp.ge.s32.totalorder %s18, 4
      %s25 = sphi 0, %s37
      %s26 = sphi 0, %s33
      %s27 = sphi 0, %s25
      %s28 = sphi 0, %s26
      %s29 = sphi 0, %s27
      %s30 = sphi 0, %s28
      %s42 = sphi 0, %s44
      %s45 = sphi 0, %s42
      %s46 = sphi 0, %s45
      %s62 = sphi 0, %s46
      %s66 = sphi 0, %s66
      %s68 = sphi 0, %s66
      %s69 = sphi 0, %s68
      %s83 = sphi 0, %s69
      %s87 = sphi 0, %s87
      %s89 = sphi 0, %s87
      %s90 = sphi 0, %s89
      %s104 = sphi 0, %s90
      %s108 = sphi 0, %s108
      %s110 = sphi 0, %s108
      %s111 = sphi 0, %s110
      %s125 = sphi 0, %s111
      %s129 = sphi 0, %s129
      %s131 = sphi 0, %s129
      %s132 = sphi 0, %s131
      %s146 = sphi 0, %s132
      %s150 = sphi 0, %s150
      %s152 = sphi 0, %s150
      %s153 = sphi 0, %s152
      %s167 = sphi 0, %s153
      %s171 = sphi 0, %s171
      %s173 = sphi 0, %s171
      %s174 = sphi 0, %s173
      %s188 = sphi 0, %s174
      %s196 = sphi 0, %s198
      %s199 = sphi 0, %s196
      %s200 = sphi 0, %s199
      %s216 = sphi 0, %s200
    $region4: #{tpu_custom_call.1} parent=1 // loop_header_branch
      %21 = sbr.rel (%p19) target = $region8
    $region5: #{tpu_custom_call.1} parent=1 // loop_body
      %s23 = ssub.s32 %s18, 1
      %s24 = ssub.s32 %s18, 2
      %s31 = sadd.s32 1, %s26
      %p32 = scmp.ge.s32.totalorder %s31, 2
      %s33 = scalar_select %p32, 0, %s31
      %s34 = sadd.s32 1, %s25
      %s35 = scalar_select %p32, %s34, %s25
      %p36 = scmp.ge.s32.totalorder %s35, 1
      %s37 = scalar_select %p36, 0, %s35
      %s38 = ssub.s32 %s25, %s37
      %s39 = ssub.s32 %s26, %s33
      %s40 = sor.u32 %s38, %s39
      %p41 = scmp.eq.s32.totalorder %s40, 0
      %s43 = sadd.s32 %s42, 1
      %s44 = scalar_select %p41, %s42, %s43
      %p47 = pneg %p41
      %p48 = scmp.eq.s32.totalorder %s18, 1
      %p49 = por %p47, %p48
      %p50 = scmp.ne.s32.totalorder %s42, %s45
      %p51 = scmp.eq.s32.totalorder %s18, 0
      %p52 = por %p50, %p51
      %p53 = scmp.ne.s32.totalorder %s42, %s45
      %p54 = scmp.eq.s32.totalorder %s23, 1
      %p55 = por %p53, %p54
      %p56 = scmp.ne.s32.totalorder %s45, %s46
      %p57 = scmp.eq.s32.totalorder %s23, 0
      %p58 = por %p56, %p57
      %p59 = scmp.ne.s32.totalorder %s45, %s46
      %p60 = scmp.eq.s32.totalorder %s24, 1
      %p61 = por %p59, %p60
      %p63 = scmp.ne.s32.totalorder %s46, %s62
      %p64 = scmp.eq.s32.totalorder %s24, 0
      %p65 = por %p63, %p64
      %s67 = sadd.s32 %s66, 1
      %p70 = scmp.eq.s32.totalorder %s18, 1
      %p71 = scmp.ne.s32.totalorder %s66, %s68
      %p72 = scmp.eq.s32.totalorder %s18, 0
      %p73 = por %p71, %p72
      %p74 = scmp.ne.s32.totalorder %s66, %s68
      %p75 = scmp.eq.s32.totalorder %s23, 1
      %p76 = por %p74, %p75
      %p77 = scmp.ne.s32.totalorder %s68, %s69
      %p78 = scmp.eq.s32.totalorder %s23, 0
      %p79 = por %p77, %p78
      %p80 = scmp.ne.s32.totalorder %s68, %s69
      %p81 = scmp.eq.s32.totalorder %s24, 1
      %p82 = por %p80, %p81
      %p84 = scmp.ne.s32.totalorder %s69, %s83
      %p85 = scmp.eq.s32.totalorder %s24, 0
      %p86 = por %p84, %p85
      %s88 = sadd.s32 %s87, 1
      %p91 = scmp.eq.s32.totalorder %s18, 1
      %p92 = scmp.ne.s32.totalorder %s87, %s89
      %p93 = scmp.eq.s32.totalorder %s18, 0
      %p94 = por %p92, %p93
      %p95 = scmp.ne.s32.totalorder %s87, %s89
      %p96 = scmp.eq.s32.totalorder %s23, 1
      %p97 = por %p95, %p96
      %p98 = scmp.ne.s32.totalorder %s89, %s90
      %p99 = scmp.eq.s32.totalorder %s23, 0
      %p100 = por %p98, %p99
      %p101 = scmp.ne.s32.totalorder %s89, %s90
      %p102 = scmp.eq.s32.totalorder %s24, 1
      %p103 = por %p101, %p102
      %p105 = scmp.ne.s32.totalorder %s90, %s104
      %p106 = scmp.eq.s32.totalorder %s24, 0
      %p107 = por %p105, %p106
      %s109 = sadd.s32 %s108, 1
      %p112 = scmp.eq.s32.totalorder %s18, 1
      %p113 = scmp.ne.s32.totalorder %s108, %s110
      %p114 = scmp.eq.s32.totalorder %s18, 0
      %p115 = por %p113, %p114
      %p116 = scmp.ne.s32.totalorder %s108, %s110
      %p117 = scmp.eq.s32.totalorder %s23, 1
      %p118 = por %p116, %p117
      %p119 = scmp.ne.s32.totalorder %s110, %s111
      %p120 = scmp.eq.s32.totalorder %s23, 0
      %p121 = por %p119, %p120
      %p122 = scmp.ne.s32.totalorder %s110, %s111
      %p123 = scmp.eq.s32.totalorder %s24, 1
      %p124 = por %p122, %p123
      %p126 = scmp.ne.s32.totalorder %s111, %s125
      %p127 = scmp.eq.s32.totalorder %s24, 0
      %p128 = por %p126, %p127
      %s130 = sadd.s32 %s129, 1
      %p133 = scmp.eq.s32.totalorder %s18, 1
      %p134 = scmp.ne.s32.totalorder %s129, %s131
      %p135 = scmp.eq.s32.totalorder %s18, 0
      %p136 = por %p134, %p135
      %p137 = scmp.ne.s32.totalorder %s129, %s131
      %p138 = scmp.eq.s32.totalorder %s23, 1
      %p139 = por %p137, %p138
      %p140 = scmp.ne.s32.totalorder %s131, %s132
      %p141 = scmp.eq.s32.totalorder %s23, 0
      %p142 = por %p140, %p141
      %p143 = scmp.ne.s32.totalorder %s131, %s132
      %p144 = scmp.eq.s32.totalorder %s24, 1
      %p145 = por %p143, %p144
      %p147 = scmp.ne.s32.totalorder %s132, %s146
      %p148 = scmp.eq.s32.totalorder %s24, 0
      %p149 = por %p147, %p148
      %s151 = sadd.s32 %s150, 1
      %p154 = scmp.eq.s32.totalorder %s18, 1
      %p155 = scmp.ne.s32.totalorder %s150, %s152
      %p156 = scmp.eq.s32.totalorder %s18, 0
      %p157 = por %p155, %p156
      %p158 = scmp.ne.s32.totalorder %s150, %s152
      %p159 = scmp.eq.s32.totalorder %s23, 1
      %p160 = por %p158, %p159
      %p161 = scmp.ne.s32.totalorder %s152, %s153
      %p162 = scmp.eq.s32.totalorder %s23, 0
      %p163 = por %p161, %p162
      %p164 = scmp.ne.s32.totalorder %s152, %s153
      %p165 = scmp.eq.s32.totalorder %s24, 1
      %p166 = por %p164, %p165
      %p168 = scmp.ne.s32.totalorder %s153, %s167
      %p169 = scmp.eq.s32.totalorder %s24, 0
      %p170 = por %p168, %p169
      %s172 = sadd.s32 %s171, 1
      %p175 = scmp.eq.s32.totalorder %s18, 1
      %p176 = scmp.ne.s32.totalorder %s171, %s173
      %p177 = scmp.eq.s32.totalorder %s18, 0
      %p178 = por %p176, %p177
      %p179 = scmp.ne.s32.totalorder %s171, %s173
      %p180 = scmp.eq.s32.totalorder %s23, 1
      %p181 = por %p179, %p180
      %p182 = scmp.ne.s32.totalorder %s173, %s174
      %p183 = scmp.eq.s32.totalorder %s23, 0
      %p184 = por %p182, %p183
      %p185 = scmp.ne.s32.totalorder %s173, %s174
      %p186 = scmp.eq.s32.totalorder %s24, 1
      %p187 = por %p185, %p186
      %p189 = scmp.ne.s32.totalorder %s174, %s188
      %p190 = scmp.eq.s32.totalorder %s24, 0
      %p191 = por %p189, %p190
      %s192 = ssub.s32 %s25, %s37
      %s193 = ssub.s32 %s26, %s33
      %s194 = sor.u32 %s192, %s193
      %p195 = scmp.eq.s32.totalorder %s194, 0
      %s197 = sadd.s32 %s196, 1
      %s198 = scalar_select %p195, %s196, %s197
      %p201 = pneg %p195
      %p202 = scmp.eq.s32.totalorder %s18, 1
      %p203 = por %p201, %p202
      %p204 = scmp.ne.s32.totalorder %s196, %s199
      %p205 = scmp.eq.s32.totalorder %s18, 0
      %p206 = por %p204, %p205
      %p207 = scmp.ne.s32.totalorder %s196, %s199
      %p208 = scmp.eq.s32.totalorder %s23, 1
      %p209 = por %p207, %p208
      %p210 = scmp.ne.s32.totalorder %s199, %s200
      %p211 = scmp.eq.s32.totalorder %s23, 0
      %p212 = por %p210, %p211
      %p213 = scmp.ne.s32.totalorder %s199, %s200
      %p214 = scmp.eq.s32.totalorder %s24, 1
      %p215 = por %p213, %p214
      %p217 = scmp.ne.s32.totalorder %s200, %s216
      %p218 = scmp.eq.s32.totalorder %s24, 0
      %p219 = por %p217, %p218
      %p220 = scmp.le.s32.totalorder 1, %s18
      %p221 = scmp.lt.s32.totalorder %s18, 3
      %p222 = pnand %p220, %p221
      %p223 = pneg %p222
      // Predicated region
      $region9: #{tpu_custom_call.1} parent=5 // pred_check
        _
      $region10: #{tpu_custom_call.1} parent=5 // pred_check_branch
        %225 = sbr.rel (%p222) target = $region12
      $region11: #{tpu_custom_call.1} parent=5 // pred_region
        %s226 = ssub.s32 %s18, 1
        // Predicated region
        $region13: #{tpu_custom_call.1} parent=11 // pred_check
          %p227 = pneg %p79
        $region14: #{tpu_custom_call.1} parent=11 // pred_check_branch
          %229 = sbr.rel (%p227) target = $region16
        $region15: #{tpu_custom_call.1} parent=11 // pred_region
          %231 = vsyncadd [#allocation3], 0
          %s232 = sshll.u32 %s1, 4
          %s233 = int_to_ptr.hbm [resolvable:$true] %s232
          %s234 = sshll.u32 [#allocation2], 4
          %s235 = int_to_ptr.vmem [resolvable:$true] %s234
          %240 = dma.hbm_to_vmem [thread:$0]  %s233, 1024, %s235, [#allocation3], 256, 256, 16
        $region16: #{tpu_custom_call.1} parent=11 // pred_fallthru
          _
        // Predicated region
        $region17: #{tpu_custom_call.1} parent=11 // pred_check
          %p241 = pneg %p100
        $region18: #{tpu_custom_call.1} parent=11 // pred_check_branch
          %243 = sbr.rel (%p241) target = $region20
        $region19: #{tpu_custom_call.1} parent=11 // pred_region
          _
        $region20: #{tpu_custom_call.1} parent=11 // pred_fallthru
          _
        // Predicated region
        $region21: #{tpu_custom_call.1} parent=11 // pred_check
          %p244 = pneg %p121
        $region22: #{tpu_custom_call.1} parent=11 // pred_check_branch
          %246 = sbr.rel (%p244) target = $region24
        $region23: #{tpu_custom_call.1} parent=11 // pred_region
          _
        $region24: #{tpu_custom_call.1} parent=11 // pred_fallthru
          _
        // Predicated region
        $region25: #{tpu_custom_call.1} parent=11 // pred_check
          %p247 = pneg %p142
        $region26: #{tpu_custom_call.1} parent=11 // pred_check_branch
          %249 = sbr.rel (%p247) target = $region28
        $region27: #{tpu_custom_call.1} parent=11 // pred_region
          %251 = vsyncadd [#allocation6], 0
          %s252 = sshll.u32 %s4, 4
          %s253 = int_to_ptr.hbm [resolvable:$true] %s252
          %s254 = sshll.u32 [#allocation5], 4
          %s255 = int_to_ptr.vmem [resolvable:$true] %s254
          %260 = dma.hbm_to_vmem [thread:$0]  %s253, 512, %s255, [#allocation6], 128, 128, 8
        $region28: #{tpu_custom_call.1} parent=11 // pred_fallthru
          _
        // Predicated region
        $region29: #{tpu_custom_call.1} parent=11 // pred_check
          %p261 = pneg %p163
        $region30: #{tpu_custom_call.1} parent=11 // pred_check_branch
          %263 = sbr.rel (%p261) target = $region32
        $region31: #{tpu_custom_call.1} parent=11 // pred_region
          _
        $region32: #{tpu_custom_call.1} parent=11 // pred_fallthru
          _
        // Predicated region
        $region33: #{tpu_custom_call.1} parent=11 // pred_check
          %p264 = pneg %p184
        $region34: #{tpu_custom_call.1} parent=11 // pred_check_branch
          %266 = sbr.rel (%p264) target = $region36
        $region35: #{tpu_custom_call.1} parent=11 // pred_region
          _
        $region36: #{tpu_custom_call.1} parent=11 // pred_fallthru
          _
      $region12: #{tpu_custom_call.1} parent=5 // pred_fallthru
        _
      %p267 = scmp.lt.s32.totalorder %s18, 2
      // Predicated region
      $region37: #{tpu_custom_call.1} parent=5 // pred_check
        %p268 = pneg %p267
      $region38: #{tpu_custom_call.1} parent=5 // pred_check_branch
        %270 = sbr.rel (%p268) target = $region40
      $region39: #{tpu_custom_call.1} parent=5 // pred_region
        // Predicated region
        $region41: #{tpu_custom_call.1} parent=39 // pred_check
          %p271 = pneg %p52
        $region42: #{tpu_custom_call.1} parent=39 // pred_check_branch
          %273 = sbr.rel (%p271) target = $region44
        $region43: #{tpu_custom_call.1} parent=39 // pred_region
          %p274 = scmp.lt.s32.totalorder %s25, 0
          %s275 = scalar_select %p274, %s25, 0
          %p276 = scmp.lt.s32.totalorder %s26, 1
          %s277 = scalar_select %p276, %s26, 1
          %s278 = smul.addr %s275, 2
          %s279 = sadd.s32 %s277, %s278
          %s280 = smul.addr %s279, 4
          %s281 = scalar_lea.vmem %s0, %s280
        $region44: #{tpu_custom_call.1} parent=39 // pred_fallthru
          _
      $region40: #{tpu_custom_call.1} parent=5 // pred_fallthru
        _
      %p282 = scmp.le.s32.totalorder 1, %s18
      %p283 = scmp.lt.s32.totalorder %s18, 3
      %p284 = pnand %p282, %p283
      %p285 = pneg %p284
      // Predicated region
      $region45: #{tpu_custom_call.1} parent=5 // pred_check
        _
      $region46: #{tpu_custom_call.1} parent=5 // pred_check_branch
        %287 = sbr.rel (%p284) target = $region48
      $region47: #{tpu_custom_call.1} parent=5 // pred_region
        %s288 = ssub.s32 %s18, 1
        // Predicated region
        $region49: #{tpu_custom_call.1} parent=47 // pred_check
          %p289 = pneg %p79
        $region50: #{tpu_custom_call.1} parent=47 // pred_check_branch
          %291 = sbr.rel (%p289) target = $region52
        $region51: #{tpu_custom_call.1} parent=47 // pred_region
          %293 = dma.done [#allocation3], 1024
        $region52: #{tpu_custom_call.1} parent=47 // pred_fallthru
          _
        // Predicated region
        $region53: #{tpu_custom_call.1} parent=47 // pred_check
          %p294 = pneg %p142
        $region54: #{tpu_custom_call.1} parent=47 // pred_check_branch
          %296 = sbr.rel (%p294) target = $region56
        $region55: #{tpu_custom_call.1} parent=47 // pred_region
          %298 = dma.done [#allocation6], 512
        $region56: #{tpu_custom_call.1} parent=47 // pred_fallthru
          _
        %p299 = scmp.lt.s32.totalorder %s27, 0
        %s300 = scalar_select %p299, %s27, 0
        %p301 = scmp.lt.s32.totalorder %s28, 1
        %s302 = scalar_select %p301, %s28, 1
        %s303 = smul.addr %s300, 2
        %s304 = sadd.s32 %s302, %s303
        %s305 = smul.addr %s304, 4
        %s306 = scalar_lea.vmem %s0, %s305
        %p307 = pneg %p58
        %p308 = pneg %p55
        %p309 = pneg %p79
        %p310 = pneg %p76
        %p311 = pneg %p100
        %p312 = pneg %p97
        %p313 = pneg %p121
        %p314 = pneg %p118
        %p315 = pneg %p142
        %p316 = pneg %p139
        %p317 = pneg %p163
        %p318 = pneg %p160
        %p319 = pneg %p184
        %p320 = pneg %p181
        %p321 = pneg %p212
        %p322 = pneg %p209
        %s323 = sand.u32 %s199, 1
        %s324 = scalar_lea.sflag [#allocation4], %s323
        %s325 = sand.u32 %s199, 1
        %s326 = smul.addr %s325, 8
        %s327 = scalar_lea.vmem [#allocation7], %s326
        %p328 = scmp.lt.s32.totalorder %s27, 0
        %s329 = scalar_select %p328, %s27, 0
        %p330 = scmp.lt.s32.totalorder %s28, 1
        %s331 = scalar_select %p330, %s28, 1
        %s332 = smul.addr %s329, 2
        %s333 = sadd.s32 %s331, %s332
        %s334 = smul.addr %s333, 4
        %s335 = scalar_lea.vmem %s0, %s334
        %v336 = vld [vmem:[%s335] sm:$0x7]
        %v337 = vadd.f32 %v336, 1.0
        %v338 = vmul.f32 %v337, 16.0
        %v339 = vsub.f32 %v338, 1.0
        %v340 = vmul.f32 %v339, 0.5
        %v341 = vlaneseq
        %v342 = vshrl.u32 %v341, 7
        %v343 = vadd.s32 %v342, 8
        %v344 = vcvt.s32.f32 %v342
        %v345 = vcvt.s32.f32 %v343
        %v346 = vperm.slane %v340, 1
        %v347 = vsub.f32 %v344, %v346
        %v348 = vsub.f32 %v345, %v346
        %v349 = vand.u32 2147483647, %v347
        %v350 = vand.u32 2147483647, %v348
        %v351 = vsub.f32 1.0, %v349
        %v352 = vsub.f32 1.0, %v350
        %v353 = vmax.f32 %v351, 0.0
        %v354 = vmax.f32 %v352, 0.0
        %v355 = vperm.slane %v340, 0
        %v356 = vsub.f32 %v344, %v355
        %v357 = vsub.f32 %v345, %v355
        %v358 = vand.u32 2147483647, %v356
        %v359 = vand.u32 2147483647, %v357
        %v360 = vsub.f32 1.0, %v358
        %v361 = vsub.f32 1.0, %v359
        %v362 = vmax.f32 %v360, 0.0
        %v363 = vmax.f32 %v361, 0.0
        %v366 = vrot.slane %v353, 1
        %v367 = vrot.slane %v353, 2
        %v368 = vrot.slane %v353, 3
        %v369 = vrot.slane %v353, 4
        %v370 = vrot.slane %v353, 5
        %v371 = vrot.slane %v353, 6
        %v372 = vrot.slane %v353, 7
        %v373 = vrot.slane %v354, 1
        %v374 = vrot.slane %v354, 2
        %v375 = vrot.slane %v354, 3
        %v376 = vrot.slane %v354, 4
        %v377 = vrot.slane %v354, 5
        %v378 = vrot.slane %v354, 6
        %v379 = vrot.slane %v354, 7
        %v380 = vperm.slane %v353, 0
        %v381 = vperm.slane %v366, 0
        %v382 = vperm.slane %v367, 0
        %v383 = vperm.slane %v368, 0
        %v384 = vperm.slane %v369, 0
        %v385 = vperm.slane %v370, 0
        %v386 = vperm.slane %v371, 0
        %v387 = vperm.slane %v372, 0
        %v388 = vperm.slane %v354, 0
        %v389 = vperm.slane %v373, 0
        %v390 = vperm.slane %v374, 0
        %v391 = vperm.slane %v375, 0
        %v392 = vperm.slane %v376, 0
        %v393 = vperm.slane %v377, 0
        %v394 = vperm.slane %v378, 0
        %v395 = vperm.slane %v379, 0
        %v412 = vmul.f32 %v380, %v362
        %v413 = vmul.f32 %v380, %v363
        %v414 = vmul.f32 %v381, %v362
        %v415 = vmul.f32 %v381, %v363
        %v416 = vmul.f32 %v382, %v362
        %v417 = vmul.f32 %v382, %v363
        %v418 = vmul.f32 %v383, %v362
        %v419 = vmul.f32 %v383, %v363
        %v420 = vmul.f32 %v384, %v362
        %v421 = vmul.f32 %v384, %v363
        %v422 = vmul.f32 %v385, %v362
        %v423 = vmul.f32 %v385, %v363
        %v424 = vmul.f32 %v386, %v362
        %v425 = vmul.f32 %v386, %v363
        %v426 = vmul.f32 %v387, %v362
        %v427 = vmul.f32 %v387, %v363
        %v428 = vmul.f32 %v388, %v362
        %v429 = vmul.f32 %v388, %v363
        %v430 = vmul.f32 %v389, %v362
        %v431 = vmul.f32 %v389, %v363
        %v432 = vmul.f32 %v390, %v362
        %v433 = vmul.f32 %v390, %v363
        %v434 = vmul.f32 %v391, %v362
        %v435 = vmul.f32 %v391, %v363
        %v436 = vmul.f32 %v392, %v362
        %v437 = vmul.f32 %v392, %v363
        %v438 = vmul.f32 %v393, %v362
        %v439 = vmul.f32 %v393, %v363
        %v440 = vmul.f32 %v394, %v362
        %v441 = vmul.f32 %v394, %v363
        %v442 = vmul.f32 %v395, %v362
        %v443 = vmul.f32 %v395, %v363
        %v444 = vld [vmem:[%s2] sm:$0xff]
        %v445 = vld [vmem:[%s2 + $0x8] sm:$0xff]
        %v446 = vld [vmem:[%s2 + $0x10] sm:$0xff]
        %v447 = vld [vmem:[%s2 + $0x18] sm:$0xff]
        %v448 = vld [vmem:[#allocation2] sm:$0xff]
        %v449 = vld [vmem:[#allocation2 + $0x8] sm:$0xff]
        %v450 = vld [vmem:[#allocation2 + $0x10] sm:$0xff]
        %v451 = vld [vmem:[#allocation2 + $0x18] sm:$0xff]
        %v452 = vld [vmem:[#allocation2 + $0x20] sm:$0xff]
        %v453 = vld [vmem:[#allocation2 + $0x28] sm:$0xff]
        %v454 = vld [vmem:[#allocation2 + $0x30] sm:$0xff]
        %v455 = vld [vmem:[#allocation2 + $0x38] sm:$0xff]
        %457 = vset.pattern.permute.xlu0 0
        %458 = vperm.xlu0 %457, %v444
        %v459 = vpop.permute.xlu0 %458
        %462 = vset.pattern.permute.xlu0 0
        %463 = vperm.xlu0 %462, %v445
        %v464 = vpop.permute.xlu0 %463
        %467 = vset.pattern.permute.xlu0 0
        %468 = vperm.xlu0 %467, %v446
        %v469 = vpop.permute.xlu0 %468
        %472 = vset.pattern.permute.xlu0 0
        %473 = vperm.xlu0 %472, %v447
        %v474 = vpop.permute.xlu0 %473
        %v476 = vperm.slane %v336, 2
        %v477 = vmul.f32 %v459, %v476
        %v478 = vmul.f32 %v464, %v476
        %v479 = vmul.f32 %v469, %v476
        %v480 = vmul.f32 %v474, %v476
        %481 = vmatpush.msra.mxu0 %v427
        %482 = vmatpush.msra.mxu0 %v426
        %483 = vmatpush.msra.mxu0 %v425
        %484 = vmatpush.msra.mxu0 %v424
        %485 = vmatpush.msra.mxu0 %v423
        %486 = vmatpush.msra.mxu0 %v422
        %487 = vmatpush.msra.mxu0 %v421
        %488 = vmatpush.msra.mxu0 %v420
        %489 = vmatpush.msra.mxu0 %v419
        %490 = vmatpush.msra.mxu0 %v418
        %491 = vmatpush.msra.mxu0 %v417
        %492 = vmatpush.msra.mxu0 %v416
        %493 = vmatpush.msra.mxu0 %v415
        %494 = vmatpush.msra.mxu0 %v414
        %495 = vmatpush.msra.mxu0 %v413
        %496 = vmatpush.msra.mxu0 %v412
        %497 = vmatmul.f32.gmra.mxu0 %v448
        %v498 = vpop.f32.mrf.mxu0
        %v499 = vadd.f32 %v477, %v498
        %500 = vmatmul.f32.gmra.mxu0 %v450
        %v501 = vpop.f32.mrf.mxu0
        %v502 = vadd.f32 %v478, %v501
        %503 = vmatmul.f32.gmra.mxu0 %v452
        %v504 = vpop.f32.mrf.mxu0
        %v505 = vadd.f32 %v479, %v504
        %506 = vmatmul.f32.gmra.mxu0 %v454
        %v507 = vpop.f32.mrf.mxu0
        %v508 = vadd.f32 %v480, %v507
        %509 = vdwg.mxu0
        %510 = vmatpush.msra.mxu0 %v443
        %511 = vmatpush.msra.mxu0 %v442
        %512 = vmatpush.msra.mxu0 %v441
        %513 = vmatpush.msra.mxu0 %v440
        %514 = vmatpush.msra.mxu0 %v439
        %515 = vmatpush.msra.mxu0 %v438
        %516 = vmatpush.msra.mxu0 %v437
        %517 = vmatpush.msra.mxu0 %v436
        %518 = vmatpush.msra.mxu0 %v435
        %519 = vmatpush.msra.mxu0 %v434
        %520 = vmatpush.msra.mxu0 %v433
        %521 = vmatpush.msra.mxu0 %v432
        %522 = vmatpush.msra.mxu0 %v431
        %523 = vmatpush.msra.mxu0 %v430
        %524 = vmatpush.msra.mxu0 %v429
        %525 = vmatpush.msra.mxu0 %v428
        %526 = vmatmul.f32.gmra.mxu0 %v449
        %v527 = vpop.f32.mrf.mxu0
        %v528 = vadd.f32 %v499, %v527
        %529 = vmatmul.f32.gmra.mxu0 %v451
        %v530 = vpop.f32.mrf.mxu0
        %v531 = vadd.f32 %v502, %v530
        %532 = vmatmul.f32.gmra.mxu0 %v453
        %v533 = vpop.f32.mrf.mxu0
        %v534 = vadd.f32 %v505, %v533
        %535 = vmatmul.f32.gmra.mxu0 %v455
        %v536 = vpop.f32.mrf.mxu0
        %v537 = vadd.f32 %v508, %v536
        %538 = vdwg.mxu0
        %539 = vset.pattern.permute.xlu0 1
        %540 = vperm.xlu0 %539, %v444
        %v541 = vpop.permute.xlu0 %540
        %543 = vset.pattern.permute.xlu0 1
        %544 = vperm.xlu0 %543, %v445
        %v545 = vpop.permute.xlu0 %544
        %547 = vset.pattern.permute.xlu0 1
        %548 = vperm.xlu0 %547, %v446
        %v549 = vpop.permute.xlu0 %548
        %551 = vset.pattern.permute.xlu0 1
        %552 = vperm.xlu0 %551, %v447
        %v553 = vpop.permute.xlu0 %552
        %v555 = vadd.f32 %v528, %v541
        %v556 = vadd.f32 %v531, %v545
        %v557 = vadd.f32 %v534, %v549
        %v558 = vadd.f32 %v537, %v553
        %v559 = vmax.f32 %v555, 0.0
        %v560 = vmax.f32 %v556, 0.0
        %v561 = vmax.f32 %v557, 0.0
        %v562 = vmax.f32 %v558, 0.0
        %v563 = vld [vmem:[%s3] sm:$0xff]
        %v564 = vld [vmem:[%s3 + $0x8] sm:$0xff]
        %v565 = vld [vmem:[%s3 + $0x10] sm:$0xff]
        %v566 = vld [vmem:[%s3 + $0x18] sm:$0xff]
        %567 = vset.pattern.permute.xlu0 2
        %568 = vperm.xlu0 %567, %v444
        %v569 = vpop.permute.xlu0 %568
        %571 = vset.pattern.permute.xlu0 2
        %572 = vperm.xlu0 %571, %v445
        %v573 = vpop.permute.xlu0 %572
        %575 = vset.pattern.permute.xlu0 2
        %576 = vperm.xlu0 %575, %v446
        %v577 = vpop.permute.xlu0 %576
        %579 = vset.pattern.permute.xlu0 2
        %580 = vperm.xlu0 %579, %v447
        %v581 = vpop.permute.xlu0 %580
        %vm583 = vcmask 261120
        %v585 = vsel %vm583, %v563, 0
        %v588 = vsel %vm583, %v564, 0
        %v591 = vsel %vm583, %v565, 0
        %v594 = vsel %vm583, %v566, 0
        %596 = vmatpush.msra.mxu0 0.0
        %597 = vmatpush.msra.mxu0 0.0
        %598 = vmatpush.msra.mxu0 0.0
        %599 = vmatpush.msra.mxu0 0.0
        %600 = vmatpush.msra.mxu0 0.0
        %601 = vmatpush.msra.mxu0 0.0
        %602 = vmatpush.msra.mxu0 0.0
        %603 = vmatpush.msra.mxu0 0.0
        %604 = vmatpush.msra.mxu0 0.0
        %605 = vmatpush.msra.mxu0 0.0
        %606 = vmatpush.msra.mxu0 0.0
        %607 = vmatpush.msra.mxu0 0.0
        %608 = vmatpush.msra.mxu0 %v562
        %609 = vmatpush.msra.mxu0 %v561
        %610 = vmatpush.msra.mxu0 %v560
        %611 = vmatpush.msra.mxu0 %v559
        %612 = vmatmul.f32.gmra.mxu0 %v585
        %v613 = vpop.f32.mrf.mxu0
        %v614 = vadd.f32 %v569, %v613
        %615 = vmatmul.f32.gmra.mxu0 %v588
        %v616 = vpop.f32.mrf.mxu0
        %v617 = vadd.f32 %v573, %v616
        %618 = vmatmul.f32.gmra.mxu0 %v591
        %v619 = vpop.f32.mrf.mxu0
        %v620 = vadd.f32 %v577, %v619
        %621 = vmatmul.f32.gmra.mxu0 %v594
        %v622 = vpop.f32.mrf.mxu0
        %v623 = vadd.f32 %v581, %v622
        %624 = vdwg.mxu0
        %v625 = vmax.f32 %v614, 0.0
        %v626 = vmax.f32 %v617, 0.0
        %v627 = vmax.f32 %v620, 0.0
        %v628 = vmax.f32 %v623, 0.0
        %v629 = vld [vmem:[#allocation5] sm:$0xff]
        %v630 = vld [vmem:[#allocation5 + $0x8] sm:$0xff]
        %v631 = vld [vmem:[#allocation5 + $0x10] sm:$0xff]
        %v632 = vld [vmem:[#allocation5 + $0x18] sm:$0xff]
        %633 = vset.pattern.permute.xlu0 3
        %634 = vperm.xlu0 %633, %v444
        %v635 = vpop.permute.xlu0 %634
        %637 = vset.pattern.permute.xlu0 3
        %638 = vperm.xlu0 %637, %v445
        %v639 = vpop.permute.xlu0 %638
        %641 = vset.pattern.permute.xlu0 3
        %642 = vperm.xlu0 %641, %v446
        %v643 = vpop.permute.xlu0 %642
        %645 = vset.pattern.permute.xlu0 3
        %646 = vperm.xlu0 %645, %v447
        %v647 = vpop.permute.xlu0 %646
        %v650 = vsel %vm583, %v629, 0
        %v653 = vsel %vm583, %v630, 0
        %v656 = vsel %vm583, %v631, 0
        %v659 = vsel %vm583, %v632, 0
        %661 = vmatpush.msra.mxu0 0.0
        %662 = vmatpush.msra.mxu0 0.0
        %663 = vmatpush.msra.mxu0 0.0
        %664 = vmatpush.msra.mxu0 0.0
        %665 = vmatpush.msra.mxu0 0.0
        %666 = vmatpush.msra.mxu0 0.0
        %667 = vmatpush.msra.mxu0 0.0
        %668 = vmatpush.msra.mxu0 0.0
        %669 = vmatpush.msra.mxu0 0.0
        %670 = vmatpush.msra.mxu0 0.0
        %671 = vmatpush.msra.mxu0 0.0
        %672 = vmatpush.msra.mxu0 0.0
        %673 = vmatpush.msra.mxu0 %v628
        %674 = vmatpush.msra.mxu0 %v627
        %675 = vmatpush.msra.mxu0 %v626
        %676 = vmatpush.msra.mxu0 %v625
        %677 = vmatmul.f32.gmra.mxu0 %v650
        %v678 = vpop.f32.mrf.mxu0
        %v679 = vadd.f32 %v635, %v678
        %680 = vmatmul.f32.gmra.mxu0 %v653
        %v681 = vpop.f32.mrf.mxu0
        %v682 = vadd.f32 %v639, %v681
        %683 = vmatmul.f32.gmra.mxu0 %v656
        %v684 = vpop.f32.mrf.mxu0
        %v685 = vadd.f32 %v643, %v684
        %686 = vmatmul.f32.gmra.mxu0 %v659
        %v687 = vpop.f32.mrf.mxu0
        %v688 = vadd.f32 %v647, %v687
        %689 = vdwg.mxu0
        %v690 = vmax.f32 %v679, 0.0
        %v691 = vmax.f32 %v682, 0.0
        %v692 = vmax.f32 %v685, 0.0
        %v693 = vmax.f32 %v688, 0.0
        %v694 = vld [vmem:[%s5] sm:$0xff]
        %v695 = vld [vmem:[%s6] sm:$0xff]
        %697 = vset.pattern.permute.xlu0 0
        %698 = vperm.xlu0 %697, %v695
        %v699 = vpop.permute.xlu0 %698
        %v702 = vsel %vm583, %v694, 0
        %704 = vmatpush.msra.mxu0 0.0
        %705 = vmatpush.msra.mxu0 0.0
        %706 = vmatpush.msra.mxu0 0.0
        %707 = vmatpush.msra.mxu0 0.0
        %708 = vmatpush.msra.mxu0 0.0
        %709 = vmatpush.msra.mxu0 0.0
        %710 = vmatpush.msra.mxu0 0.0
        %711 = vmatpush.msra.mxu0 0.0
        %712 = vmatpush.msra.mxu0 0.0
        %713 = vmatpush.msra.mxu0 0.0
        %714 = vmatpush.msra.mxu0 0.0
        %715 = vmatpush.msra.mxu0 0.0
        %716 = vmatpush.msra.mxu0 %v693
        %717 = vmatpush.msra.mxu0 %v692
        %718 = vmatpush.msra.mxu0 %v691
        %719 = vmatpush.msra.mxu0 %v690
        %720 = vmatmul.f32.gmra.mxu0 %v702
        %v721 = vpop.f32.mrf.mxu0
        %v722 = vadd.f32 %v699, %v721
        %723 = vdwg.mxu0
        %724 = vst [vmem:[%s327] sm:$0xff] %v722
        %s725 = sand.u32 %s199, 1
        %s726 = scalar_lea.sflag [#allocation4], %s725
        %s727 = sand.u32 %s199, 1
        %s728 = smul.addr %s727, 8
        %s729 = scalar_lea.vmem [#allocation7], %s728
        // Predicated region
        $region57: #{tpu_custom_call.1} parent=47 // pred_check
          %p730 = pneg %p209
        $region58: #{tpu_custom_call.1} parent=47 // pred_check_branch
          %732 = sbr.rel (%p730) target = $region60
        $region59: #{tpu_custom_call.1} parent=47 // pred_region
          %734 = vsyncadd %s726, 0
          %s735 = smul.addr %s27, 2
          %s736 = sadd.s32 %s28, %s735
          %s737 = smul.addr %s736, 8
          %s738 = scalar_lea.hbm %s7, %s737
          %s740 = sshll.u32 %s729, 4
          %s741 = int_to_ptr.vmem [resolvable:$true] %s740
          %s742 = sshll.u32 %s738, 4
          %s743 = int_to_ptr.hbm [resolvable:$true] %s742
          %745 = dma.vmem_to_hbm [thread:$0]  %s741, 128, %s743, %s726
        $region60: #{tpu_custom_call.1} parent=47 // pred_fallthru
          _
      $region48: #{tpu_custom_call.1} parent=5 // pred_fallthru
        _
      %p746 = scmp.le.s32.totalorder 2, %s18
      // Predicated region
      $region61: #{tpu_custom_call.1} parent=5 // pred_check
        %p747 = pneg %p746
      $region62: #{tpu_custom_call.1} parent=5 // pred_check_branch
        %749 = sbr.rel (%p747) target = $region64
      $region63: #{tpu_custom_call.1} parent=5 // pred_region
        %s750 = ssub.s32 %s18, 2
        // Predicated region
        $region65: #{tpu_custom_call.1} parent=63 // pred_check
          %p751 = pneg %p215
        $region66: #{tpu_custom_call.1} parent=63 // pred_check_branch
          %753 = sbr.rel (%p751) target = $region68
        $region67: #{tpu_custom_call.1} parent=63 // pred_region
          %s754 = sand.u32 %s200, 1
          %s755 = scalar_lea.sflag [#allocation4], %s754
          %s756 = sand.u32 %s200, 1
          %s757 = smul.addr %s756, 8
          %s758 = scalar_lea.vmem [#allocation7], %s757
          %760 = dma.done %s755, 128
        $region68: #{tpu_custom_call.1} parent=63 // pred_fallthru
          _
      $region64: #{tpu_custom_call.1} parent=5 // pred_fallthru
        _
    $region6: #{tpu_custom_call.1} parent=1 // loop_footer
      %s22 = sadd.s32 1, %s18
    $region7: #{tpu_custom_call.1} parent=1 // loop_footer_branch
      %17 = sbr.rel target = $region3
    $region8: #{tpu_custom_call.1} parent=1 // loop_exit
      _
    %761 = vsyncpa [#allocation3], 1
    %s762 = scalar_lea.sflag [#allocation3], 1
    %763 = vsyncpa %s762, 1
    %764 = vsyncpa [#allocation6], 1
    %765 = vsyncpa [#allocation4], 1
    %s766 = scalar_lea.sflag [#allocation4], 1
    %767 = vsyncpa %s766, 1

</llo_original>
